<compile_context>
chip_gen: v7x
topology: tpu7x:2x2x1
jax: 0.10.0
libtpu: 0.0.40
codegen_flags: <defaults>
</compile_context>

<pallas_src>
import functools

import jax
import jax.numpy as jnp
import numpy as np
from jax.experimental import pallas as pl
from jax.experimental.pallas import tpu as pltpu


# -----------------------------------------------------------------------------
# Pallas kernel: per-batch Conv1d(k=3, pad=1) + ReLU, channels-last.
# -----------------------------------------------------------------------------
def ner_cnn_kernel(x_ref, w_ref, b_ref, o_ref):
    # x_ref: (1, L, D)   one batch element, channels-last [token, hidden]
    # w_ref: (3*D, D)    im2col conv weight, row index = k*D + in_channel
    # b_ref: (1, D)      conv bias
    # o_ref: (1, L, D)   output (same length, padding=1)
    x = x_ref[0]                                   # [L, D]
    L, D = x.shape

    zrow = jnp.zeros((1, D), dtype=x.dtype)
    # x_pad[t]   (left neighbor,  tap k=0):  x[t-1], zero at t=0
    x_m1 = jnp.concatenate([zrow, x[: L - 1, :]], axis=0)
    # x_pad[t+2] (right neighbor, tap k=2):  x[t+1], zero at t=L-1
    x_p1 = jnp.concatenate([x[1:, :], zrow], axis=0)

    # im2col: [L, 3D], columns ordered (k, in_channel) to match w_ref layout.
    col = jnp.concatenate([x_m1, x, x_p1], axis=1)

    y = jnp.dot(col, w_ref[...], preferred_element_type=jnp.float32) + b_ref[...]
    o_ref[0] = jnp.maximum(y, 0.0).astype(o_ref.dtype)   # ReLU fused
    # TODO(synk): dropout is treated as eval-mode identity (no pltpu.prng_* mask).


# -----------------------------------------------------------------------------
# Wrapper: weight re-layout + pallas_call.
# -----------------------------------------------------------------------------
@jax.jit
def ner_cnn_forward(inputs, conv_weight, conv_bias):
    """inputs: [B, L, D] (channels-last, as the PyTorch module receives them).
    conv_weight: torch Conv1d layout [D_out, D_in, K=3]; conv_bias: [D_out]."""
    B, L, D = inputs.shape
    # w2d[k*D + i, o] = W[o, i, k]
    w2d = jnp.transpose(conv_weight, (2, 1, 0)).reshape(3 * D, D)
    b2d = conv_bias.reshape(1, D)

    out = pl.pallas_call(
        ner_cnn_kernel,
        out_shape=jax.ShapeDtypeStruct((B, L, D), inputs.dtype),
        grid_spec=pltpu.PrefetchScalarGridSpec(
            num_scalar_prefetch=0,
            grid=(B,),
            in_specs=[
                pl.BlockSpec((1, L, D), lambda b: (b, 0, 0)),
                pl.BlockSpec((3 * D, D), lambda b: (0, 0)),
                pl.BlockSpec((1, D), lambda b: (0, 0)),
            ],
            out_specs=pl.BlockSpec((1, L, D), lambda b: (b, 0, 0)),
        ),
        compiler_params=pltpu.CompilerParams(
            dimension_semantics=("parallel",)),
    )(inputs, w2d, b2d)
    return out


# -----------------------------------------------------------------------------
# Pure-JAX reference (mirrors the PyTorch forward, eval mode).
# -----------------------------------------------------------------------------
def reference_forward(inputs, conv_weight, conv_bias):
    B, L, D = inputs.shape
    xp = jnp.pad(inputs, ((0, 0), (1, 1), (0, 0)))
    y = jnp.broadcast_to(conv_bias[None, None, :], (B, L, D)).astype(jnp.float32)
    for k in range(3):
        y = y + jnp.einsum(
            "bld,od->blo", xp[:, k:k + L, :], conv_weight[:, :, k],
            precision=jax.lax.Precision.HIGHEST)
    return jnp.maximum(y, 0.0)


if __name__ == "__main__":
    # Small shapes consistent with the module: batch=2, token_len=16,
    # hidden_size=128 (lane-dense).
    B, L, D = 2, 16, 128

    key = jax.random.PRNGKey(0)
    k_x, k_w, k_b = jax.random.split(key, 3)
    inputs = jax.random.normal(k_x, (B, L, D), jnp.float32)
    conv_weight = 0.05 * jax.random.normal(k_w, (D, D, 3), jnp.float32)  # [out, in, k]
    conv_bias = 0.05 * jax.random.normal(k_b, (D,), jnp.float32)

    out = ner_cnn_forward(inputs, conv_weight, conv_bias)
    jax.block_until_ready(out)

    ref = reference_forward(inputs, conv_weight, conv_bias)

    assert out.shape == (B, L, D)
    np.testing.assert_allclose(np.asarray(out), np.asarray(ref),
                               rtol=1e-4, atol=1e-4)
    print("KERNEL_OK")
</pallas_src>

<mosaic_0001>
module attributes {stable_mosaic.version = 11 : i64} {
  func.func @ner_cnn_kernel(%arg0: i32, %arg1: memref<1x16x128xf32, #tpu.memory_space<vmem>>, %arg2: memref<384x128xf32, #tpu.memory_space<vmem>>, %arg3: memref<1x128xf32, #tpu.memory_space<vmem>>, %arg4: memref<1x16x128xf32, #tpu.memory_space<vmem>>) attributes {dimension_semantics = [#tpu.dimension_semantics<parallel>], iteration_bounds = array<i64: 2>, scalar_prefetch = 0 : i64, scratch_operands = 0 : i64, tpu.core_type = #tpu.core_type<tc>, window_params = [{transform_indices = @transform_0, window_bounds = array<i64: 1, 16, 128>}, {pipeline_mode = #tpu.pipeline_mode<synchronous>, transform_indices = @transform_1, window_bounds = array<i64: 384, 128>}, {pipeline_mode = #tpu.pipeline_mode<synchronous>, transform_indices = @transform_2, window_bounds = array<i64: 1, 128>}, {transform_indices = @transform_3, window_bounds = array<i64: 1, 16, 128>}]} {
    %c0 = arith.constant 0 : index
    %c0_0 = arith.constant 0 : index
    %c0_1 = arith.constant 0 : index
    %0 = vector.load %arg1[%c0, %c0_0, %c0_1] : memref<1x16x128xf32, #tpu.memory_space<vmem>>, vector<1x16x128xf32>
    %1 = vector.shape_cast %0 : vector<1x16x128xf32> to vector<16x128xf32>
    %cst = arith.constant 0.000000e+00 : f32
    %2 = vector.broadcast %cst : f32 to vector<1x128xf32>
    %3 = vector.extract_strided_slice %1 {offsets = [0, 0], sizes = [15, 128], strides = [1, 1]} : vector<16x128xf32> to vector<15x128xf32>
    %4 = tpu.concatenate %2, %3 in 0 : vector<1x128xf32>, vector<15x128xf32> -> vector<16x128xf32>
    %5 = vector.extract_strided_slice %1 {offsets = [1, 0], sizes = [15, 128], strides = [1, 1]} : vector<16x128xf32> to vector<15x128xf32>
    %6 = tpu.concatenate %5, %2 in 0 : vector<15x128xf32>, vector<1x128xf32> -> vector<16x128xf32>
    %7 = tpu.concatenate %4, %1, %6 in 1 : vector<16x128xf32>, vector<16x128xf32>, vector<16x128xf32> -> vector<16x384xf32>
    %c0_2 = arith.constant 0 : index
    %c0_3 = arith.constant 0 : index
    %8 = vector.load %arg2[%c0_2, %c0_3] : memref<384x128xf32, #tpu.memory_space<vmem>>, vector<384x128xf32>
    %cst_4 = arith.constant dense<0.000000e+00> : vector<16x128xf32>
    %9 = tpu.matmul %7, %8, %cst_4 {dimension_numbers = #tpu.dot_dimension_numbers<[1], [0], [0], [1], [0, 0, 1, 1], [], []>} : vector<16x384xf32>, vector<384x128xf32>, vector<16x128xf32> -> vector<16x128xf32>
    %c0_5 = arith.constant 0 : index
    %c0_6 = arith.constant 0 : index
    %10 = vector.load %arg3[%c0_5, %c0_6] : memref<1x128xf32, #tpu.memory_space<vmem>>, vector<1x128xf32>
    %11 = vector.broadcast %10 : vector<1x128xf32> to vector<16x128xf32>
    %12 = arith.addf %9, %11 : vector<16x128xf32>
    %cst_7 = arith.constant 0.000000e+00 : f32
    %13 = vector.broadcast %cst_7 : f32 to vector<16x128xf32>
    %14 = arith.maximumf %12, %13 : vector<16x128xf32>
    %c0_8 = arith.constant 0 : index
    %c0_9 = arith.constant 0 : index
    %c0_10 = arith.constant 0 : index
    %15 = vector.load %arg4[%c0_8, %c0_9, %c0_10] : memref<1x16x128xf32, #tpu.memory_space<vmem>>, vector<1x16x128xf32>
    %16 = vector.shape_cast %15 : vector<1x16x128xf32> to vector<16x128xf32>
    %17 = vector.shape_cast %14 : vector<16x128xf32> to vector<1x16x128xf32>
    tpu.vector_store %arg4[%c0_8, %c0_9, %c0_10], %17 {strides = array<i32>} : memref<1x16x128xf32, #tpu.memory_space<vmem>>, vector<1x16x128xf32>,
    return
  }
  func.func @transform_0(%arg0: i32) -> (i32, i32, i32) {
    %c0_i32 = arith.constant 0 : i32
    %c0_i32_0 = arith.constant 0 : i32
    %c0_i32_1 = arith.constant 0 : i32
    return %arg0, %c0_i32, %c0_i32_0 : i32, i32, i32
  }
  func.func @transform_1(%arg0: i32) -> (i32, i32) {
    %c0_i32 = arith.constant 0 : i32
    %c0_i32_0 = arith.constant 0 : i32
    %c0_i32_1 = arith.constant 0 : i32
    return %c0_i32, %c0_i32_0 : i32, i32
  }
  func.func @transform_2(%arg0: i32) -> (i32, i32) {
    %c0_i32 = arith.constant 0 : i32
    %c0_i32_0 = arith.constant 0 : i32
    %c0_i32_1 = arith.constant 0 : i32
    return %c0_i32, %c0_i32_0 : i32, i32
  }
  func.func @transform_3(%arg0: i32) -> (i32, i32, i32) {
    %c0_i32 = arith.constant 0 : i32
    %c0_i32_0 = arith.constant 0 : i32
    %c0_i32_1 = arith.constant 0 : i32
    return %arg0, %c0_i32, %c0_i32_0 : i32, i32, i32
  }
}

</mosaic_0001>

<llo_original>
// kernel: ner_cnn_forward.1
$region0: #{ner_cnn_forward.1}
  #allocation0 [shape = 'u32[]', space=smem, size = 0x4, offset = 0x4, fixed_abs, tag = 'smem constant byte address 0x4 - core index']
  #allocation1 [shape = 'u32[144,128]{1,0:T(1,128)}', space=vmem, size = 0x12000, scoped, tag = 'internal scratch']
  %s0 = inlined_call_operand.vmem [shape: f32[2,16,128], index: 0, kind: input, shape index: {}]
  %s1 = inlined_call_operand.vmem [shape: f32[384,128], index: 1, kind: input, shape index: {}]
  %s2 = inlined_call_operand.vmem [shape: f32[1,128], index: 2, kind: input, shape index: {}]
  %s3 = inlined_call_operand.hbm [shape: f32[2,16,128], index: 3, kind: output, shape index: {}]
  %s4 = sld [smem:[#allocation0]]
  $region45: #{ner_cnn_forward.1} parent=0
    _
  %s6 = ssub.s32 1, %s4
  %s7 = scalar_select 0, %s6, %s4
  $region1: #{ner_cnn_forward.1} parent=0
    #allocation2 [shape = 'u8[16384]{0}', space=vmem, size = 0x4000, scoped, tag = 'output window, operand 0']
    #allocation3 [shape = 's32[2]{0}', space=sflag, size = 0x8, scoped, tag = 'scoped memory for ner_cnn_forward.1']
    %8 = vsyncpa [#allocation3], 0
    %s9 = scalar_lea.sflag [#allocation3], 1
    %10 = vsyncpa %s9, 0
    loop: start=0, step=1, limit=4
    $region2: #{ner_cnn_forward.1} parent=1 // loop_pre_header
      _
    $region3: #{ner_cnn_forward.1} parent=1 // loop_header
      %s12 = sphi 0, %s16
      %p13 = scmp.ge.s32.totalorder %s12, 4
      %s22 = sphi 0, %s24
      %s25 = sphi 0, %s22
      %s26 = sphi 0, %s25
      %s42 = sphi 0, %s26
      %s46 = sphi 0, %s46
      %s48 = sphi 0, %s46
      %s49 = sphi 0, %s48
      %s63 = sphi 0, %s49
      %s67 = sphi 0, %s67
      %s69 = sphi 0, %s67
      %s70 = sphi 0, %s69
      %s84 = sphi 0, %s70
      %s90 = sphi 0, %s92
      %s93 = sphi 0, %s90
      %s94 = sphi 0, %s93
      %s110 = sphi 0, %s94
    $region4: #{ner_cnn_forward.1} parent=1 // loop_header_branch
      %15 = sbr.rel (%p13) target = $region8
    $region5: #{ner_cnn_forward.1} parent=1 // loop_body
      %s17 = ssub.s32 %s12, 1
      %s18 = ssub.s32 %s12, 2
      %s19 = sadd.s32 %s12, 1
      %s20 = ssub.s32 %s12, %s19
      %p21 = scmp.eq.s32.totalorder %s20, 0
      %s23 = sadd.s32 %s22, 1
      %s24 = scalar_select %p21, %s22, %s23
      %p27 = pneg %p21
      %p28 = scmp.eq.s32.totalorder %s12, 1
      %p29 = por %p27, %p28
      %p30 = scmp.ne.s32.totalorder %s22, %s25
      %p31 = scmp.eq.s32.totalorder %s12, 0
      %p32 = por %p30, %p31
      %p33 = scmp.ne.s32.totalorder %s22, %s25
      %p34 = scmp.eq.s32.totalorder %s17, 1
      %p35 = por %p33, %p34
      %p36 = scmp.ne.s32.totalorder %s25, %s26
      %p37 = scmp.eq.s32.totalorder %s17, 0
      %p38 = por %p36, %p37
      %p39 = scmp.ne.s32.totalorder %s25, %s26
      %p40 = scmp.eq.s32.totalorder %s18, 1
      %p41 = por %p39, %p40
      %p43 = scmp.ne.s32.totalorder %s26, %s42
      %p44 = scmp.eq.s32.totalorder %s18, 0
      %p45 = por %p43, %p44
      %s47 = sadd.s32 %s46, 1
      %p50 = scmp.eq.s32.totalorder %s12, 1
      %p51 = scmp.ne.s32.totalorder %s46, %s48
      %p52 = scmp.eq.s32.totalorder %s12, 0
      %p53 = por %p51, %p52
      %p54 = scmp.ne.s32.totalorder %s46, %s48
      %p55 = scmp.eq.s32.totalorder %s17, 1
      %p56 = por %p54, %p55
      %p57 = scmp.ne.s32.totalorder %s48, %s49
      %p58 = scmp.eq.s32.totalorder %s17, 0
      %p59 = por %p57, %p58
      %p60 = scmp.ne.s32.totalorder %s48, %s49
      %p61 = scmp.eq.s32.totalorder %s18, 1
      %p62 = por %p60, %p61
      %p64 = scmp.ne.s32.totalorder %s49, %s63
      %p65 = scmp.eq.s32.totalorder %s18, 0
      %p66 = por %p64, %p65
      %s68 = sadd.s32 %s67, 1
      %p71 = scmp.eq.s32.totalorder %s12, 1
      %p72 = scmp.ne.s32.totalorder %s67, %s69
      %p73 = scmp.eq.s32.totalorder %s12, 0
      %p74 = por %p72, %p73
      %p75 = scmp.ne.s32.totalorder %s67, %s69
      %p76 = scmp.eq.s32.totalorder %s17, 1
      %p77 = por %p75, %p76
      %p78 = scmp.ne.s32.totalorder %s69, %s70
      %p79 = scmp.eq.s32.totalorder %s17, 0
      %p80 = por %p78, %p79
      %p81 = scmp.ne.s32.totalorder %s69, %s70
      %p82 = scmp.eq.s32.totalorder %s18, 1
      %p83 = por %p81, %p82
      %p85 = scmp.ne.s32.totalorder %s70, %s84
      %p86 = scmp.eq.s32.totalorder %s18, 0
      %p87 = por %p85, %p86
      %s88 = ssub.s32 %s12, %s19
      %p89 = scmp.eq.s32.totalorder %s88, 0
      %s91 = sadd.s32 %s90, 1
      %s92 = scalar_select %p89, %s90, %s91
      %p95 = pneg %p89
      %p96 = scmp.eq.s32.totalorder %s12, 1
      %p97 = por %p95, %p96
      %p98 = scmp.ne.s32.totalorder %s90, %s93
      %p99 = scmp.eq.s32.totalorder %s12, 0
      %p100 = por %p98, %p99
      %p101 = scmp.ne.s32.totalorder %s90, %s93
      %p102 = scmp.eq.s32.totalorder %s17, 1
      %p103 = por %p101, %p102
      %p104 = scmp.ne.s32.totalorder %s93, %s94
      %p105 = scmp.eq.s32.totalorder %s17, 0
      %p106 = por %p104, %p105
      %p107 = scmp.ne.s32.totalorder %s93, %s94
      %p108 = scmp.eq.s32.totalorder %s18, 1
      %p109 = por %p107, %p108
      %p111 = scmp.ne.s32.totalorder %s94, %s110
      %p112 = scmp.eq.s32.totalorder %s18, 0
      %p113 = por %p111, %p112
      %p114 = scmp.le.s32.totalorder 1, %s12
      %p115 = scmp.lt.s32.totalorder %s12, 3
      %p116 = pnand %p114, %p115
      %p117 = pneg %p116
      // Predicated region
      $region9: #{ner_cnn_forward.1} parent=5 // pred_check
        _
      $region10: #{ner_cnn_forward.1} parent=5 // pred_check_branch
        %119 = sbr.rel (%p116) target = $region12
      $region11: #{ner_cnn_forward.1} parent=5 // pred_region
        %s120 = ssub.s32 %s12, 1
        // Predicated region
        $region13: #{ner_cnn_forward.1} parent=11 // pred_check
          %p121 = pneg %p59
        $region14: #{ner_cnn_forward.1} parent=11 // pred_check_branch
          %123 = sbr.rel (%p121) target = $region16
        $region15: #{ner_cnn_forward.1} parent=11 // pred_region
          _
        $region16: #{ner_cnn_forward.1} parent=11 // pred_fallthru
          _
        // Predicated region
        $region17: #{ner_cnn_forward.1} parent=11 // pred_check
          %p124 = pneg %p80
        $region18: #{ner_cnn_forward.1} parent=11 // pred_check_branch
          %126 = sbr.rel (%p124) target = $region20
        $region19: #{ner_cnn_forward.1} parent=11 // pred_region
          _
        $region20: #{ner_cnn_forward.1} parent=11 // pred_fallthru
          _
      $region12: #{ner_cnn_forward.1} parent=5 // pred_fallthru
        _
      %p127 = scmp.lt.s32.totalorder %s12, 2
      // Predicated region
      $region21: #{ner_cnn_forward.1} parent=5 // pred_check
        %p128 = pneg %p127
      $region22: #{ner_cnn_forward.1} parent=5 // pred_check_branch
        %130 = sbr.rel (%p128) target = $region24
      $region23: #{ner_cnn_forward.1} parent=5 // pred_region
        // Predicated region
        $region25: #{ner_cnn_forward.1} parent=23 // pred_check
          %p131 = pneg %p32
        $region26: #{ner_cnn_forward.1} parent=23 // pred_check_branch
          %133 = sbr.rel (%p131) target = $region28
        $region27: #{ner_cnn_forward.1} parent=23 // pred_region
          %p134 = scmp.lt.s32.totalorder %s12, 1
          %s135 = scalar_select %p134, %s12, 1
          %s136 = smul.addr %s135, 2
          %s137 = smul.addr %s136, 8
          %s138 = scalar_lea.vmem %s0, %s137
        $region28: #{ner_cnn_forward.1} parent=23 // pred_fallthru
          _
      $region24: #{ner_cnn_forward.1} parent=5 // pred_fallthru
        _
      %p139 = scmp.le.s32.totalorder 1, %s12
      %p140 = scmp.lt.s32.totalorder %s12, 3
      %p141 = pnand %p139, %p140
      %p142 = pneg %p141
      // Predicated region
      $region29: #{ner_cnn_forward.1} parent=5 // pred_check
        _
      $region30: #{ner_cnn_forward.1} parent=5 // pred_check_branch
        %144 = sbr.rel (%p141) target = $region32
      $region31: #{ner_cnn_forward.1} parent=5 // pred_region
        %s145 = ssub.s32 %s12, 1
        %p146 = scmp.lt.s32.totalorder %s17, 1
        %s147 = scalar_select %p146, %s17, 1
        %s148 = smul.addr %s147, 2
        %s149 = smul.addr %s148, 8
        %s150 = scalar_lea.vmem %s0, %s149
        %p151 = pneg %p38
        %p152 = pneg %p35
        %p153 = pneg %p59
        %p154 = pneg %p56
        %p155 = pneg %p80
        %p156 = pneg %p77
        %p157 = pneg %p106
        %p158 = pneg %p103
        %s159 = sand.u32 %s93, 1
        %s160 = scalar_lea.sflag [#allocation3], %s159
        %s161 = sand.u32 %s93, 1
        %s162 = smul.addr %s161, 16
        %s163 = scalar_lea.vmem [#allocation2], %s162
        %p164 = scmp.lt.s32.totalorder %s17, 1
        %s165 = scalar_select %p164, %s17, 1
        %s166 = smul.addr %s165, 2
        %s167 = smul.addr %s166, 8
        %s168 = scalar_lea.vmem %s0, %s167
        %v169 = vld [vmem:[%s168] sm:$0xff]
        %v170 = vld [vmem:[%s168 + $0x8] sm:$0xff]
        %vm173 = vcmask 1040384
        %v174 = vrot.slane %v169, 7
        %v175 = vrot.slane %v170, 7
        %v176 = vsel %vm173, %v174, %v175
        %v179 = vsel %vm173, 0.0, %v174
        %vm180 = vcmask 1046528
        %v181 = vrot.slane %v169, 1
        %v182 = vrot.slane %v170, 1
        %v183 = vsel %vm180, %v181, %v182
        %v186 = vsel %vm180, %v182, 0.0
        %v187 = vld [vmem:[%s1] sm:$0xff]
        %v188 = vld [vmem:[%s1 + $0x8] sm:$0xff]
        %v189 = vld [vmem:[%s1 + $0x10] sm:$0xff]
        %v190 = vld [vmem:[%s1 + $0x18] sm:$0xff]
        %v191 = vld [vmem:[%s1 + $0x20] sm:$0xff]
        %v192 = vld [vmem:[%s1 + $0x28] sm:$0xff]
        %v193 = vld [vmem:[%s1 + $0x30] sm:$0xff]
        %v194 = vld [vmem:[%s1 + $0x38] sm:$0xff]
        %v195 = vld [vmem:[%s1 + $0x40] sm:$0xff]
        %v196 = vld [vmem:[%s1 + $0x48] sm:$0xff]
        %v197 = vld [vmem:[%s1 + $0x50] sm:$0xff]
        %v198 = vld [vmem:[%s1 + $0x58] sm:$0xff]
        %v199 = vld [vmem:[%s1 + $0x60] sm:$0xff]
        %v200 = vld [vmem:[%s1 + $0x68] sm:$0xff]
        %v201 = vld [vmem:[%s1 + $0x70] sm:$0xff]
        %v202 = vld [vmem:[%s1 + $0x78] sm:$0xff]
        %v203 = vld [vmem:[%s1 + $0x80] sm:$0xff]
        %v204 = vld [vmem:[%s1 + $0x88] sm:$0xff]
        %v205 = vld [vmem:[%s1 + $0x90] sm:$0xff]
        %v206 = vld [vmem:[%s1 + $0x98] sm:$0xff]
        %v207 = vld [vmem:[%s1 + $0xa0] sm:$0xff]
        %v208 = vld [vmem:[%s1 + $0xa8] sm:$0xff]
        %v209 = vld [vmem:[%s1 + $0xb0] sm:$0xff]
        %v210 = vld [vmem:[%s1 + $0xb8] sm:$0xff]
        %v211 = vld [vmem:[%s1 + $0xc0] sm:$0xff]
        %v212 = vld [vmem:[%s1 + $0xc8] sm:$0xff]
        %v213 = vld [vmem:[%s1 + $0xd0] sm:$0xff]
        %v214 = vld [vmem:[%s1 + $0xd8] sm:$0xff]
        %v215 = vld [vmem:[%s1 + $0xe0] sm:$0xff]
        %v216 = vld [vmem:[%s1 + $0xe8] sm:$0xff]
        %v217 = vld [vmem:[%s1 + $0xf0] sm:$0xff]
        %v218 = vld [vmem:[%s1 + $0xf8] sm:$0xff]
        %v219 = vld [vmem:[%s1 + $0x100] sm:$0xff]
        %v220 = vld [vmem:[%s1 + $0x108] sm:$0xff]
        %v221 = vld [vmem:[%s1 + $0x110] sm:$0xff]
        %v222 = vld [vmem:[%s1 + $0x118] sm:$0xff]
        %v223 = vld [vmem:[%s1 + $0x120] sm:$0xff]
        %v224 = vld [vmem:[%s1 + $0x128] sm:$0xff]
        %v225 = vld [vmem:[%s1 + $0x130] sm:$0xff]
        %v226 = vld [vmem:[%s1 + $0x138] sm:$0xff]
        %v227 = vld [vmem:[%s1 + $0x140] sm:$0xff]
        %v228 = vld [vmem:[%s1 + $0x148] sm:$0xff]
        %v229 = vld [vmem:[%s1 + $0x150] sm:$0xff]
        %v230 = vld [vmem:[%s1 + $0x158] sm:$0xff]
        %v231 = vld [vmem:[%s1 + $0x160] sm:$0xff]
        %v232 = vld [vmem:[%s1 + $0x168] sm:$0xff]
        %v233 = vld [vmem:[%s1 + $0x170] sm:$0xff]
        %v234 = vld [vmem:[%s1 + $0x178] sm:$0xff]
        %v235 = vld [vmem:[%s2] sm:$0x1]
        %v237 = vlaneseq
        %v238 = vshrl.u32 %v237, 7
        %v239 = vsub.s32 0, %v238
        %v240 = vrot.slane %v235, %v239
        %242 = vmatprep.subr.mxu0 0.0
        %243 = vmatpush1.msra.mxu0 %v187
        %244 = vmatprep.subr.mxu0 0.0
        %245 = vmatpush1.msra.mxu0 %v188
        %246 = vmatprep.subr.mxu0 0.0
        %247 = vmatpush1.msra.mxu0 %v189
        %248 = vmatprep.subr.mxu0 0.0
        %249 = vmatpush1.msra.mxu0 %v190
        %250 = vmatprep.subr.mxu0 0.0
        %251 = vmatpush1.msra.mxu0 %v191
        %252 = vmatprep.subr.mxu0 0.0
        %253 = vmatpush1.msra.mxu0 %v192
        %254 = vmatprep.subr.mxu0 0.0
        %255 = vmatpush1.msra.mxu0 %v193
        %256 = vmatprep.subr.mxu0 0.0
        %257 = vmatpush1.msra.mxu0 %v194
        %258 = vmatprep.subr.mxu0 0.0
        %259 = vmatpush1.msra.mxu0 %v195
        %260 = vmatprep.subr.mxu0 0.0
        %261 = vmatpush1.msra.mxu0 %v196
        %262 = vmatprep.subr.mxu0 0.0
        %263 = vmatpush1.msra.mxu0 %v197
        %264 = vmatprep.subr.mxu0 0.0
        %265 = vmatpush1.msra.mxu0 %v198
        %266 = vmatprep.subr.mxu0 0.0
        %267 = vmatpush1.msra.mxu0 %v199
        %268 = vmatprep.subr.mxu0 0.0
        %269 = vmatpush1.msra.mxu0 %v200
        %270 = vmatprep.subr.mxu0 0.0
        %271 = vmatpush1.msra.mxu0 %v201
        %272 = vmatprep.subr.mxu0 0.0
        %273 = vmatpush1.msra.mxu0 %v202
        %274 = vmatprep.subr.mxu0 0.0
        %275 = vmatpush1.msra.mxu0 %v203
        %276 = vmatprep.subr.mxu0 0.0
        %277 = vmatpush1.msra.mxu0 %v204
        %278 = vmatprep.subr.mxu0 0.0
        %279 = vmatpush1.msra.mxu0 %v205
        %280 = vmatprep.subr.mxu0 0.0
        %281 = vmatpush1.msra.mxu0 %v206
        %282 = vmatprep.subr.mxu0 0.0
        %283 = vmatpush1.msra.mxu0 %v207
        %284 = vmatprep.subr.mxu0 0.0
        %285 = vmatpush1.msra.mxu0 %v208
        %286 = vmatprep.subr.mxu0 0.0
        %287 = vmatpush1.msra.mxu0 %v209
        %288 = vmatprep.subr.mxu0 0.0
        %289 = vmatpush1.msra.mxu0 %v210
        %290 = vmatprep.subr.mxu0 0.0
        %291 = vmatpush1.msra.mxu0 %v211
        %292 = vmatprep.subr.mxu0 0.0
        %293 = vmatpush1.msra.mxu0 %v212
        %294 = vmatprep.subr.mxu0 0.0
        %295 = vmatpush1.msra.mxu0 %v213
        %296 = vmatprep.subr.mxu0 0.0
        %297 = vmatpush1.msra.mxu0 %v214
        %298 = vmatprep.subr.mxu0 0.0
        %299 = vmatpush1.msra.mxu0 %v215
        %300 = vmatprep.subr.mxu0 0.0
        %301 = vmatpush1.msra.mxu0 %v216
        %302 = vmatprep.subr.mxu0 0.0
        %303 = vmatpush1.msra.mxu0 %v217
        %304 = vmatprep.subr.mxu0 0.0
        %305 = vmatpush1.msra.mxu0 %v218
        %306 = vmatprep.mubr.f32.mxu0 %v169
        %307 = vmatmul.mubr.f32.gmra.mrb[0].mxu0 %v179
        %v308 = vpop.f32.mrb[0].mxu0
        %v309 = vadd.f32 %v240, %v308
        %v310 = vpop.f32.mrb[0].mxu0
        %311 = vmatprep.mubr.f32.mxu0 %v170
        %312 = vmatmul.mubr.f32.gmra.mrb[0].mxu0 %v176
        %v313 = vpop.f32.mrb[0].mxu0
        %v314 = vadd.f32 %v240, %v313
        %v315 = vpop.f32.mrb[0].mxu0
        %316 = vdwg.mxu0
        %317 = vmatprep.subr.mxu0 0.0
        %318 = vmatpush1.msra.mxu0 %v219
        %319 = vmatprep.subr.mxu0 0.0
        %320 = vmatpush1.msra.mxu0 %v220
        %321 = vmatprep.subr.mxu0 0.0
        %322 = vmatpush1.msra.mxu0 %v221
        %323 = vmatprep.subr.mxu0 0.0
        %324 = vmatpush1.msra.mxu0 %v222
        %325 = vmatprep.subr.mxu0 0.0
        %326 = vmatpush1.msra.mxu0 %v223
        %327 = vmatprep.subr.mxu0 0.0
        %328 = vmatpush1.msra.mxu0 %v224
        %329 = vmatprep.subr.mxu0 0.0
        %330 = vmatpush1.msra.mxu0 %v225
        %331 = vmatprep.subr.mxu0 0.0
        %332 = vmatpush1.msra.mxu0 %v226
        %333 = vmatprep.subr.mxu0 0.0
        %334 = vmatpush1.msra.mxu0 %v227
        %335 = vmatprep.subr.mxu0 0.0
        %336 = vmatpush1.msra.mxu0 %v228
        %337 = vmatprep.subr.mxu0 0.0
        %338 = vmatpush1.msra.mxu0 %v229
        %339 = vmatprep.subr.mxu0 0.0
        %340 = vmatpush1.msra.mxu0 %v230
        %341 = vmatprep.subr.mxu0 0.0
        %342 = vmatpush1.msra.mxu0 %v231
        %343 = vmatprep.subr.mxu0 0.0
        %344 = vmatpush1.msra.mxu0 %v232
        %345 = vmatprep.subr.mxu0 0.0
        %346 = vmatpush1.msra.mxu0 %v233
        %347 = vmatprep.subr.mxu0 0.0
        %348 = vmatpush1.msra.mxu0 %v234
        %349 = vmatprep.subr.mxu0 0.0
        %350 = vmatpush1.msra.mxu0 0.0
        %351 = vmatprep.subr.mxu0 0.0
        %352 = vmatpush1.msra.mxu0 0.0
        %353 = vmatprep.subr.mxu0 0.0
        %354 = vmatpush1.msra.mxu0 0.0
        %355 = vmatprep.subr.mxu0 0.0
        %356 = vmatpush1.msra.mxu0 0.0
        %357 = vmatprep.subr.mxu0 0.0
        %358 = vmatpush1.msra.mxu0 0.0
        %359 = vmatprep.subr.mxu0 0.0
        %360 = vmatpush1.msra.mxu0 0.0
        %361 = vmatprep.subr.mxu0 0.0
        %362 = vmatpush1.msra.mxu0 0.0
        %363 = vmatprep.subr.mxu0 0.0
        %364 = vmatpush1.msra.mxu0 0.0
        %365 = vmatprep.subr.mxu0 0.0
        %366 = vmatpush1.msra.mxu0 0.0
        %367 = vmatprep.subr.mxu0 0.0
        %368 = vmatpush1.msra.mxu0 0.0
        %369 = vmatprep.subr.mxu0 0.0
        %370 = vmatpush1.msra.mxu0 0.0
        %371 = vmatprep.subr.mxu0 0.0
        %372 = vmatpush1.msra.mxu0 0.0
        %373 = vmatprep.subr.mxu0 0.0
        %374 = vmatpush1.msra.mxu0 0.0
        %375 = vmatprep.subr.mxu0 0.0
        %376 = vmatpush1.msra.mxu0 0.0
        %377 = vmatprep.subr.mxu0 0.0
        %378 = vmatpush1.msra.mxu0 0.0
        %379 = vmatprep.subr.mxu0 0.0
        %380 = vmatpush1.msra.mxu0 0.0
        %381 = vmatprep.mubr.f32.mxu0 0.0
        %382 = vmatmul.mubr.f32.gmra.mrb[0].mxu0 %v183
        %v383 = vpop.f32.mrb[0].mxu0
        %v384 = vadd.f32 %v309, %v383
        %v385 = vpop.f32.mrb[0].mxu0
        %386 = vmatprep.mubr.f32.mxu0 0.0
        %387 = vmatmul.mubr.f32.gmra.mrb[0].mxu0 %v186
        %v388 = vpop.f32.mrb[0].mxu0
        %v389 = vadd.f32 %v314, %v388
        %v390 = vpop.f32.mrb[0].mxu0
        %391 = vdwg.mxu0
        %v392 = vmax.f32 %v384, 0.0
        %v393 = vmax.f32 %v389, 0.0
        %394 = vst [vmem:[%s163] sm:$0xff] %v392
        %395 = vst [vmem:[%s163 + $0x8] sm:$0xff] %v393
        %s396 = sand.u32 %s93, 1
        %s397 = scalar_lea.sflag [#allocation3], %s396
        %s398 = sand.u32 %s93, 1
        %s399 = smul.addr %s398, 16
        %s400 = scalar_lea.vmem [#allocation2], %s399
        // Predicated region
        $region33: #{ner_cnn_forward.1} parent=31 // pred_check
          %p401 = pneg %p103
        $region34: #{ner_cnn_forward.1} parent=31 // pred_check_branch
          %403 = sbr.rel (%p401) target = $region36
        $region35: #{ner_cnn_forward.1} parent=31 // pred_region
          %s405 = ssub.s32 256, 256
          %406 = vsyncadd %s397, %s405
          %s407 = smul.addr %s17, 2
          %s408 = smul.addr %s407, 128
          %s409 = scalar_lea.hbm %s3, %s408
          %s410 = sshll.u32 %s400, 4
          %s411 = int_to_ptr.vmem [resolvable:$true] %s410
          %416 = dma.vmem_to_hbm [thread:$0]  %s411, 256, %s409, %s397, 128, 128, 8
        $region36: #{ner_cnn_forward.1} parent=31 // pred_fallthru
          _
      $region32: #{ner_cnn_forward.1} parent=5 // pred_fallthru
        _
      %p417 = scmp.le.s32.totalorder 2, %s12
      // Predicated region
      $region37: #{ner_cnn_forward.1} parent=5 // pred_check
        %p418 = pneg %p417
      $region38: #{ner_cnn_forward.1} parent=5 // pred_check_branch
        %420 = sbr.rel (%p418) target = $region40
      $region39: #{ner_cnn_forward.1} parent=5 // pred_region
        %s421 = ssub.s32 %s12, 2
        // Predicated region
        $region41: #{ner_cnn_forward.1} parent=39 // pred_check
          %p422 = pneg %p109
        $region42: #{ner_cnn_forward.1} parent=39 // pred_check_branch
          %424 = sbr.rel (%p422) target = $region44
        $region43: #{ner_cnn_forward.1} parent=39 // pred_region
          %s425 = sand.u32 %s94, 1
          %s426 = scalar_lea.sflag [#allocation3], %s425
          %s427 = sand.u32 %s94, 1
          %s428 = smul.addr %s427, 16
          %s429 = scalar_lea.vmem [#allocation2], %s428
          %430 = dma.done %s426, 256
        $region44: #{ner_cnn_forward.1} parent=39 // pred_fallthru
          _
      $region40: #{ner_cnn_forward.1} parent=5 // pred_fallthru
        _
    $region6: #{ner_cnn_forward.1} parent=1 // loop_footer
      %s16 = sadd.s32 1, %s12
    $region7: #{ner_cnn_forward.1} parent=1 // loop_footer_branch
      %11 = sbr.rel target = $region3
    $region8: #{ner_cnn_forward.1} parent=1 // loop_exit
      _
    %431 = vsyncpa [#allocation3], 1
    %s432 = scalar_lea.sflag [#allocation3], 1
    %433 = vsyncpa %s432, 1

</llo_original>
